<compile_context>
chip_gen: v5e
topology: v5e:2x2
jax: 0.10.0
libtpu: 0.0.40
codegen_flags: <defaults>
</compile_context>

<pallas_src>
import jax
import jax.numpy as jnp
from jax.experimental import pallas as pl
from jax.experimental.pallas import tpu as pltpu


def _srl_bce_kernel(scores_ref, labels_ref, part_ref, sum_acc, pos_acc, cnt_acc):
    c = pl.program_id(1)

    @pl.when(c == 0)
    def _init():
        sum_acc[...] = jnp.zeros_like(sum_acc)
        pos_acc[...] = jnp.zeros_like(pos_acc)
        cnt_acc[...] = jnp.zeros_like(cnt_acc)

    s = scores_ref[...].astype(jnp.float32)          # (row_block, 128)
    y = labels_ref[...].astype(jnp.float32)          # (row_block, 128)

    # log(sigmoid(s)) / log(1 - sigmoid(s)) via a shared softplus term:
    #   t = log(1 + exp(-|s|)); log_p = min(s,0) - t; log_1mp = -max(s,0) - t
    t = jnp.log(1.0 + jnp.exp(-jnp.abs(s)))
    log_p = jnp.maximum(jnp.minimum(s, 0.0) - t, -100.0)      # BCELoss log clamp
    log_1mp = jnp.maximum(-jnp.maximum(s, 0.0) - t, -100.0)   # BCELoss log clamp
    losses = -(y * log_p + (1.0 - y) * log_1mp)

    is_pos = y != 0.0
    sum_acc[...] += jnp.sum(losses, axis=0, keepdims=True)
    pos_acc[...] += jnp.sum(jnp.where(is_pos, losses, 0.0), axis=0, keepdims=True)
    cnt_acc[...] += jnp.sum(is_pos.astype(jnp.float32), axis=0, keepdims=True)

    @pl.when(c == pl.num_programs(1) - 1)
    def _finalize():
        # One dense (8,128) block per parallel shard:
        #   row 0: sum(losses); row 1: sum(losses[is_pos]); row 2: count(is_pos)
        row = jax.lax.broadcasted_iota(jnp.int32, part_ref.shape, 0)
        part_ref[...] = jnp.where(
            row == 0, sum_acc[...],
            jnp.where(row == 1, pos_acc[...],
                      jnp.where(row == 2, cnt_acc[...], 0.0)))


def srl_bce_loss(scores, labels, *, row_block=None):
    """Forward of SRL_BCELoss (eval mode, norm=False).

    Returns (loss, neg_loss, pos_loss) =
            (losses.mean(), losses[~is_pos].mean(), losses[is_pos].mean()).
    """
    assert scores.shape == labels.shape
    b = int(scores.size)
    lanes = 128

    rows = -(-b // lanes)                                # ceil(b / 128)
    if row_block is None:
        row_block = min(512, -(-rows // 8) * 8)          # <=512 rows, multiple of 8
    row_block = max(8, (row_block // 8) * 8)
    # Split the row range across both TensorCores (v7x megacore) when there is
    # more than one chunk of work; single-TC chips just iterate it.
    n_par = 2 if rows > row_block else 1
    rows_padded = -(-rows // (row_block * n_par)) * (row_block * n_par)
    n_chunks = rows_padded // (row_block * n_par)
    pad = rows_padded * lanes - b

    # Padding: score = -1e9 => zero BCE loss for label 0; label 0 => not positive.
    s2d = jnp.pad(scores.reshape(-1), (0, pad),
                  constant_values=-1e9).reshape(rows_padded, lanes)
    y2d = jnp.pad(labels.reshape(-1), (0, pad),
                  constant_values=0).reshape(rows_padded, lanes)

    in_spec = pl.BlockSpec((row_block, lanes),
                           lambda p, c: (p * n_chunks + c, 0))
    out_spec = pl.BlockSpec((8, lanes), lambda p, c: (p, 0))

    parts = pl.pallas_call(
        _srl_bce_kernel,
        out_shape=jax.ShapeDtypeStruct((n_par * 8, lanes), jnp.float32),
        grid_spec=pltpu.PrefetchScalarGridSpec(
            num_scalar_prefetch=0,
            grid=(n_par, n_chunks),
            in_specs=[in_spec, in_spec],
            out_specs=out_spec,
            scratch_shapes=[pltpu.VMEM((1, lanes), jnp.float32)] * 3,
        ),
        compiler_params=pltpu.CompilerParams(
            dimension_semantics=("parallel", "arbitrary")),
    )(s2d, y2d)

    parts = parts.reshape(n_par, 8, lanes)
    total = jnp.sum(parts[:, 0, :])
    pos_sum = jnp.sum(parts[:, 1, :])
    n_pos = jnp.sum(parts[:, 2, :])
    n_total = jnp.float32(b)

    loss = total / n_total                              # losses.mean()
    pos_loss = pos_sum / n_pos                          # losses[is_pos].mean()
    neg_loss = (total - pos_sum) / (n_total - n_pos)    # losses[~is_pos].mean()
    return loss, neg_loss, pos_loss


def _reference(scores, labels):
    p = jax.nn.sigmoid(scores.astype(jnp.float32))
    y = labels.astype(jnp.float32)
    losses = -(y * jnp.maximum(jnp.log(p), -100.0)
               + (1.0 - y) * jnp.maximum(jnp.log(1.0 - p), -100.0))
    is_pos = y != 0.0
    pos_loss = jnp.sum(jnp.where(is_pos, losses, 0.0)) / jnp.sum(is_pos)
    neg_loss = jnp.sum(jnp.where(is_pos, 0.0, losses)) / jnp.sum(~is_pos)
    return losses.mean(), neg_loss, pos_loss


if __name__ == "__main__":
    key = jax.random.PRNGKey(0)
    k1, k2, k3 = jax.random.split(key, 3)

    # Module parameter from __init__: alpha = 0.0 (scalar nn.Parameter);
    # pos_rate = sigmoid(alpha) only feeds the sampler, not the returned loss.
    # TODO(synk): sampler.update(pos_rate) and the alpha SGD/Adam optimizer step
    # are host-side bookkeeping with no Pallas equivalent; forward() math only.

    # Case 1: small per-batch score/label vectors, like the module's inputs.
    B1 = 8
    scores1 = jax.random.normal(k1, (B1,), dtype=jnp.float32)
    labels1 = jnp.array([1., 0., 1., 0., 0., 1., 0., 1.], dtype=jnp.float32)
    out1 = srl_bce_loss(scores1, labels1)
    jax.block_until_ready(out1)
    ref1 = _reference(scores1, labels1)
    for got, want in zip(out1, ref1):
        assert jnp.allclose(got, want, atol=1e-5, rtol=1e-5), (got, want)

    # Case 2: exercises lane padding, the multi-chunk reduction grid and the
    # 2-way 'parallel' (megacore) axis with a deliberately small row_block.
    B2 = 3000
    scores2 = jax.random.normal(k2, (B2,), dtype=jnp.float32)
    labels2 = jax.random.bernoulli(k3, 0.5, (B2,)).astype(jnp.float32)
    out2 = srl_bce_loss(scores2, labels2, row_block=8)
    jax.block_until_ready(out2)
    ref2 = _reference(scores2, labels2)
    for got, want in zip(out2, ref2):
        assert jnp.allclose(got, want, atol=1e-5, rtol=1e-5), (got, want)

    print("KERNEL_OK")
</pallas_src>

<mosaic_0001>
module attributes {stable_mosaic.version = 11 : i64} {
  func.func @_srl_bce_kernel(%arg0: i32, %arg1: i32, %arg2: memref<8x128xf32, #tpu.memory_space<vmem>>, %arg3: memref<8x128xf32, #tpu.memory_space<vmem>>, %arg4: memref<8x128xf32, #tpu.memory_space<vmem>>, %arg5: memref<1x128xf32, #tpu.memory_space<vmem>>, %arg6: memref<1x128xf32, #tpu.memory_space<vmem>>, %arg7: memref<1x128xf32, #tpu.memory_space<vmem>>) attributes {dimension_semantics = [#tpu.dimension_semantics<parallel>, #tpu.dimension_semantics<arbitrary>], iteration_bounds = array<i64: 1, 1>, scalar_prefetch = 0 : i64, scratch_operands = 3 : i64, tpu.core_type = #tpu.core_type<tc>, window_params = [{transform_indices = @transform_0, window_bounds = array<i64: 8, 128>}, {transform_indices = @transform_1, window_bounds = array<i64: 8, 128>}, {transform_indices = @transform_2, window_bounds = array<i64: 8, 128>}]} {
    %c0_i32 = arith.constant 0 : i32
    %0 = arith.cmpi eq, %arg1, %c0_i32 : i32
    %1 = arith.extui %0 : i1 to i32
    %c0_i32_0 = arith.constant 0 : i32
    %2 = arith.cmpi ne, %1, %c0_i32_0 : i32
    scf.if %2 {
      %cst_31 = arith.constant 0.000000e+00 : f32
      %55 = vector.broadcast %cst_31 : f32 to vector<1x128xf32>
      %c0_32 = arith.constant 0 : index
      %c0_33 = arith.constant 0 : index
      %56 = vector.load %arg5[%c0_32, %c0_33] : memref<1x128xf32, #tpu.memory_space<vmem>>, vector<1x128xf32>
      tpu.vector_store %arg5[%c0_32, %c0_33], %55 {strides = array<i32>} : memref<1x128xf32, #tpu.memory_space<vmem>>, vector<1x128xf32>,
      %cst_34 = arith.constant 0.000000e+00 : f32
      %57 = vector.broadcast %cst_34 : f32 to vector<1x128xf32>
      %c0_35 = arith.constant 0 : index
      %c0_36 = arith.constant 0 : index
      %58 = vector.load %arg6[%c0_35, %c0_36] : memref<1x128xf32, #tpu.memory_space<vmem>>, vector<1x128xf32>
      tpu.vector_store %arg6[%c0_35, %c0_36], %57 {strides = array<i32>} : memref<1x128xf32, #tpu.memory_space<vmem>>, vector<1x128xf32>,
      %cst_37 = arith.constant 0.000000e+00 : f32
      %59 = vector.broadcast %cst_37 : f32 to vector<1x128xf32>
      %c0_38 = arith.constant 0 : index
      %c0_39 = arith.constant 0 : index
      %60 = vector.load %arg7[%c0_38, %c0_39] : memref<1x128xf32, #tpu.memory_space<vmem>>, vector<1x128xf32>
      tpu.vector_store %arg7[%c0_38, %c0_39], %59 {strides = array<i32>} : memref<1x128xf32, #tpu.memory_space<vmem>>, vector<1x128xf32>,
    } else {
    }
    %c0 = arith.constant 0 : index
    %c0_1 = arith.constant 0 : index
    %3 = vector.load %arg2[%c0, %c0_1] : memref<8x128xf32, #tpu.memory_space<vmem>>, vector<8x128xf32>
    %c0_2 = arith.constant 0 : index
    %c0_3 = arith.constant 0 : index
    %4 = vector.load %arg3[%c0_2, %c0_3] : memref<8x128xf32, #tpu.memory_space<vmem>>, vector<8x128xf32>
    %5 = math.absf %3 : vector<8x128xf32>
    %cst = arith.constant 0.000000e+00 : f32
    %6 = vector.broadcast %cst : f32 to vector<8x128xf32>
    %7 = arith.subf %6, %5 : vector<8x128xf32>
    %8 = math.exp %7 : vector<8x128xf32>
    %cst_4 = arith.constant 1.000000e+00 : f32
    %9 = vector.broadcast %cst_4 : f32 to vector<8x128xf32>
    %10 = arith.addf %9, %8 : vector<8x128xf32>
    %11 = math.log %10 : vector<8x128xf32>
    %cst_5 = arith.constant 0.000000e+00 : f32
    %12 = vector.broadcast %cst_5 : f32 to vector<8x128xf32>
    %13 = arith.minimumf %3, %12 : vector<8x128xf32>
    %14 = arith.subf %13, %11 : vector<8x128xf32>
    %cst_6 = arith.constant -1.000000e+02 : f32
    %15 = vector.broadcast %cst_6 : f32 to vector<8x128xf32>
    %16 = arith.maximumf %14, %15 : vector<8x128xf32>
    %cst_7 = arith.constant 0.000000e+00 : f32
    %17 = vector.broadcast %cst_7 : f32 to vector<8x128xf32>
    %18 = arith.maximumf %3, %17 : vector<8x128xf32>
    %cst_8 = arith.constant 0.000000e+00 : f32
    %19 = vector.broadcast %cst_8 : f32 to vector<8x128xf32>
    %20 = arith.subf %19, %18 : vector<8x128xf32>
    %21 = arith.subf %20, %11 : vector<8x128xf32>
    %cst_9 = arith.constant -1.000000e+02 : f32
    %22 = vector.broadcast %cst_9 : f32 to vector<8x128xf32>
    %23 = arith.maximumf %21, %22 : vector<8x128xf32>
    %24 = arith.mulf %4, %16 : vector<8x128xf32>
    %cst_10 = arith.constant 1.000000e+00 : f32
    %25 = vector.broadcast %cst_10 : f32 to vector<8x128xf32>
    %26 = arith.subf %25, %4 : vector<8x128xf32>
    %27 = arith.mulf %26, %23 : vector<8x128xf32>
    %28 = arith.addf %24, %27 : vector<8x128xf32>
    %cst_11 = arith.constant 0.000000e+00 : f32
    %29 = vector.broadcast %cst_11 : f32 to vector<8x128xf32>
    %30 = arith.subf %29, %28 : vector<8x128xf32>
    %cst_12 = arith.constant 0.000000e+00 : f32
    %31 = vector.broadcast %cst_12 : f32 to vector<8x128xf32>
    %32 = arith.cmpf one, %4, %31 : vector<8x128xf32>
    %c0_13 = arith.constant 0 : index
    %c0_14 = arith.constant 0 : index
    %33 = vector.load %arg5[%c0_13, %c0_14] : memref<1x128xf32, #tpu.memory_space<vmem>>, vector<1x128xf32>
    %cst_15 = arith.constant dense<0.000000e+00> : vector<128xf32>
    %34 = vector.multi_reduction <add>, %30, %cst_15 [0] : vector<8x128xf32> to vector<128xf32>
    %35 = vector.shape_cast %34 : vector<128xf32> to vector<1x128xf32>
    %36 = arith.addf %33, %35 : vector<1x128xf32>
    %c0_16 = arith.constant 0 : index
    %c0_17 = arith.constant 0 : index
    %37 = vector.load %arg5[%c0_16, %c0_17] : memref<1x128xf32, #tpu.memory_space<vmem>>, vector<1x128xf32>
    tpu.vector_store %arg5[%c0_16, %c0_17], %36 {strides = array<i32>} : memref<1x128xf32, #tpu.memory_space<vmem>>, vector<1x128xf32>,
    %c0_18 = arith.constant 0 : index
    %c0_19 = arith.constant 0 : index
    %38 = vector.load %arg6[%c0_18, %c0_19] : memref<1x128xf32, #tpu.memory_space<vmem>>, vector<1x128xf32>
    %cst_20 = arith.constant 0.000000e+00 : f32
    %39 = vector.broadcast %cst_20 : f32 to vector<8x128xf32>
    %40 = arith.select %32, %30, %39 : vector<8x128xi1>, vector<8x128xf32>
    %cst_21 = arith.constant dense<0.000000e+00> : vector<128xf32>
    %41 = vector.multi_reduction <add>, %40, %cst_21 [0] : vector<8x128xf32> to vector<128xf32>
    %42 = vector.shape_cast %41 : vector<128xf32> to vector<1x128xf32>
    %43 = arith.addf %38, %42 : vector<1x128xf32>
    %c0_22 = arith.constant 0 : index
    %c0_23 = arith.constant 0 : index
    %44 = vector.load %arg6[%c0_22, %c0_23] : memref<1x128xf32, #tpu.memory_space<vmem>>, vector<1x128xf32>
    tpu.vector_store %arg6[%c0_22, %c0_23], %43 {strides = array<i32>} : memref<1x128xf32, #tpu.memory_space<vmem>>, vector<1x128xf32>,
    %c0_24 = arith.constant 0 : index
    %c0_25 = arith.constant 0 : index
    %45 = vector.load %arg7[%c0_24, %c0_25] : memref<1x128xf32, #tpu.memory_space<vmem>>, vector<1x128xf32>
    %46 = arith.extui %32 : vector<8x128xi1> to vector<8x128xi32>
    %47 = arith.sitofp %46 : vector<8x128xi32> to vector<8x128xf32>
    %cst_26 = arith.constant dense<0.000000e+00> : vector<128xf32>
    %48 = vector.multi_reduction <add>, %47, %cst_26 [0] : vector<8x128xf32> to vector<128xf32>
    %49 = vector.shape_cast %48 : vector<128xf32> to vector<1x128xf32>
    %50 = arith.addf %45, %49 : vector<1x128xf32>
    %c0_27 = arith.constant 0 : index
    %c0_28 = arith.constant 0 : index
    %51 = vector.load %arg7[%c0_27, %c0_28] : memref<1x128xf32, #tpu.memory_space<vmem>>, vector<1x128xf32>
    tpu.vector_store %arg7[%c0_27, %c0_28], %50 {strides = array<i32>} : memref<1x128xf32, #tpu.memory_space<vmem>>, vector<1x128xf32>,
    %c0_i32_29 = arith.constant 0 : i32
    %52 = arith.cmpi eq, %arg1, %c0_i32_29 : i32
    %53 = arith.extui %52 : i1 to i32
    %c0_i32_30 = arith.constant 0 : i32
    %54 = arith.cmpi ne, %53, %c0_i32_30 : i32
    scf.if %54 {
      %55 = tpu.iota {dimensions = array<i32: 0>} : vector<8x128xi32>
      %c0_i32_31 = arith.constant 0 : i32
      %56 = vector.broadcast %c0_i32_31 : i32 to vector<8x128xi32>
      %57 = arith.cmpi eq, %55, %56 : vector<8x128xi32>
      %c0_32 = arith.constant 0 : index
      %c0_33 = arith.constant 0 : index
      %58 = vector.load %arg5[%c0_32, %c0_33] : memref<1x128xf32, #tpu.memory_space<vmem>>, vector<1x128xf32>
      %c1_i32 = arith.constant 1 : i32
      %59 = vector.broadcast %c1_i32 : i32 to vector<8x128xi32>
      %60 = arith.cmpi eq, %55, %59 : vector<8x128xi32>
      %c0_34 = arith.constant 0 : index
      %c0_35 = arith.constant 0 : index
      %61 = vector.load %arg6[%c0_34, %c0_35] : memref<1x128xf32, #tpu.memory_space<vmem>>, vector<1x128xf32>
      %c2_i32 = arith.constant 2 : i32
      %62 = vector.broadcast %c2_i32 : i32 to vector<8x128xi32>
      %63 = arith.cmpi eq, %55, %62 : vector<8x128xi32>
      %c0_36 = arith.constant 0 : index
      %c0_37 = arith.constant 0 : index
      %64 = vector.load %arg7[%c0_36, %c0_37] : memref<1x128xf32, #tpu.memory_space<vmem>>, vector<1x128xf32>
      %cst_38 = arith.constant 0.000000e+00 : f32
      %65 = vector.shape_cast %64 : vector<1x128xf32> to vector<1x128xf32>
      %66 = vector.broadcast %65 : vector<1x128xf32> to vector<8x128xf32>
      %67 = vector.broadcast %cst_38 : f32 to vector<8x128xf32>
      %68 = arith.select %63, %66, %67 : vector<8x128xi1>, vector<8x128xf32>
      %69 = vector.shape_cast %61 : vector<1x128xf32> to vector<1x128xf32>
      %70 = vector.broadcast %69 : vector<1x128xf32> to vector<8x128xf32>
      %71 = arith.select %60, %70, %68 : vector<8x128xi1>, vector<8x128xf32>
      %72 = vector.shape_cast %58 : vector<1x128xf32> to vector<1x128xf32>
      %73 = vector.broadcast %72 : vector<1x128xf32> to vector<8x128xf32>
      %74 = arith.select %57, %73, %71 : vector<8x128xi1>, vector<8x128xf32>
      %c0_39 = arith.constant 0 : index
      %c0_40 = arith.constant 0 : index
      %75 = vector.load %arg4[%c0_39, %c0_40] : memref<8x128xf32, #tpu.memory_space<vmem>>, vector<8x128xf32>
      tpu.vector_store %arg4[%c0_39, %c0_40], %74 {strides = array<i32>} : memref<8x128xf32, #tpu.memory_space<vmem>>, vector<8x128xf32>,
    } else {
    }
    return
  }
  func.func @transform_0(%arg0: i32, %arg1: i32) -> (i32, i32) {
    %c1_i32 = arith.constant 1 : i32
    %0 = arith.muli %arg0, %c1_i32 : i32
    %1 = arith.addi %0, %arg1 : i32
    %c0_i32 = arith.constant 0 : i32
    %c0_i32_0 = arith.constant 0 : i32
    return %1, %c0_i32 : i32, i32
  }
  func.func @transform_1(%arg0: i32, %arg1: i32) -> (i32, i32) {
    %c1_i32 = arith.constant 1 : i32
    %0 = arith.muli %arg0, %c1_i32 : i32
    %1 = arith.addi %0, %arg1 : i32
    %c0_i32 = arith.constant 0 : i32
    %c0_i32_0 = arith.constant 0 : i32
    return %1, %c0_i32 : i32, i32
  }
  func.func @transform_2(%arg0: i32, %arg1: i32) -> (i32, i32) {
    %c0_i32 = arith.constant 0 : i32
    %c0_i32_0 = arith.constant 0 : i32
    return %arg0, %c0_i32 : i32, i32
  }
}

</mosaic_0001>

<llo_original>
// kernel: tpu_custom_call.1
$region0: #{tpu_custom_call.1}
  #allocation0 [shape = 'u32[]', space=smem, size = 0x4, offset = 0x4, fixed_abs, tag = 'smem constant byte address 0x4 - core index']
  #allocation1 [shape = 'u32[72,128]{1,0:T(1,128)}', space=vmem, size = 0x9000, scoped, tag = 'internal scratch']
  #allocation2 [shape = 'f32[1,128]{1,0:T(1,128)}', space=vmem, size = 0x200, scoped, tag = 'scratch operand']
  #allocation3 [shape = 'f32[1,128]{1,0:T(1,128)}', space=vmem, size = 0x200, scoped, tag = 'scratch operand']
  #allocation4 [shape = 'f32[1,128]{1,0:T(1,128)}', space=vmem, size = 0x200, scoped, tag = 'scratch operand']
  %s0 = inlined_call_operand.hbm [shape: f32[8,128], index: 0, kind: input, shape index: {}]
  %s1 = inlined_call_operand.hbm [shape: f32[8,128], index: 1, kind: input, shape index: {}]
  %s2 = inlined_call_operand.hbm [shape: f32[8,128], index: 2, kind: output, shape index: {}]
  %s3 = sld [smem:[#allocation0]]
  $region34: #{tpu_custom_call.1} parent=0
    _
  %s5 = ssub.s32 1, %s3
  %s6 = scalar_select 0, %s5, %s3
  $region1: #{tpu_custom_call.1} parent=0
    #allocation5 [shape = 'u8[4096]{0}', space=vmem, size = 0x1000, scoped, tag = 'input window, operand 0, single buffered']
    #allocation6 [shape = 's32[1]{0}', space=sflag, size = 0x4, scoped, tag = 'scoped memory for tpu_custom_call.1']
    #allocation7 [shape = 's32[1]{0}', space=sflag, size = 0x4, scoped, tag = 'scoped memory for tpu_custom_call.1']
    #allocation8 [shape = 'u8[4096]{0}', space=vmem, size = 0x1000, scoped, tag = 'input window, operand 1, single buffered']
    #allocation9 [shape = 's32[1]{0}', space=sflag, size = 0x4, scoped, tag = 'scoped memory for tpu_custom_call.1']
    #allocation10 [shape = 'u8[4096]{0}', space=vmem, size = 0x1000, scoped, tag = 'output window, operand 0, single buffered']
    %7 = vsyncpa [#allocation6], 0
    %8 = vsyncpa [#allocation9], 0
    %9 = vsyncpa [#allocation7], 0
    // Predicated region
    $region2: #{tpu_custom_call.1} parent=1 // pred_check
      _
    $region3: #{tpu_custom_call.1} parent=1 // pred_check_branch
      %11 = sbr.rel (0) target = $region5
    $region4: #{tpu_custom_call.1} parent=1 // pred_region
      %s12 = sadd.s32 0, 0
      %14 = vsyncadd [#allocation6], 0
      %s15 = smul.addr %s12, 8
      %s16 = scalar_lea.hbm %s0, %s15
      %s18 = sshll.u32 %s16, 4
      %s19 = int_to_ptr.hbm [resolvable:$true] %s18
      %s20 = sshll.u32 [#allocation5], 4
      %s21 = int_to_ptr.vmem [resolvable:$true] %s20
      %23 = dma.hbm_to_vmem [thread:$0]  %s19, 128, %s21, [#allocation6]
    $region5: #{tpu_custom_call.1} parent=1 // pred_fallthru
      _
    // Predicated region
    $region6: #{tpu_custom_call.1} parent=1 // pred_check
      _
    $region7: #{tpu_custom_call.1} parent=1 // pred_check_branch
      %25 = sbr.rel (0) target = $region9
    $region8: #{tpu_custom_call.1} parent=1 // pred_region
      %s26 = sadd.s32 0, 0
      %28 = vsyncadd [#allocation9], 0
      %s29 = smul.addr %s26, 8
      %s30 = scalar_lea.hbm %s1, %s29
      %s32 = sshll.u32 %s30, 4
      %s33 = int_to_ptr.hbm [resolvable:$true] %s32
      %s34 = sshll.u32 [#allocation8], 4
      %s35 = int_to_ptr.vmem [resolvable:$true] %s34
      %37 = dma.hbm_to_vmem [thread:$0]  %s33, 128, %s35, [#allocation9]
    $region9: #{tpu_custom_call.1} parent=1 // pred_fallthru
      _
    // Predicated region
    $region10: #{tpu_custom_call.1} parent=1 // pred_check
      _
    $region11: #{tpu_custom_call.1} parent=1 // pred_check_branch
      %39 = sbr.rel (0) target = $region13
    $region12: #{tpu_custom_call.1} parent=1 // pred_region
      %41 = dma.done [#allocation6], 128
    $region13: #{tpu_custom_call.1} parent=1 // pred_fallthru
      _
    // Predicated region
    $region14: #{tpu_custom_call.1} parent=1 // pred_check
      _
    $region15: #{tpu_custom_call.1} parent=1 // pred_check_branch
      %43 = sbr.rel (0) target = $region17
    $region16: #{tpu_custom_call.1} parent=1 // pred_region
      %45 = dma.done [#allocation9], 128
    $region17: #{tpu_custom_call.1} parent=1 // pred_fallthru
      _
    %s46 = sadd.s32 0, 0
    %s47 = sadd.s32 0, 0
    %p48 = scmp.eq.s32.totalorder 0, 0
    // Predicated region
    $region18: #{tpu_custom_call.1} parent=1 // pred_check
      %p49 = pneg %p48
    $region19: #{tpu_custom_call.1} parent=1 // pred_check_branch
      %51 = sbr.rel (%p49) target = $region21
    $region20: #{tpu_custom_call.1} parent=1 // pred_region
      %52 = vst [vmem:[#allocation2] sm:$0x1] 0.0
      %53 = vst [vmem:[#allocation3] sm:$0x1] 0.0
      %54 = vst [vmem:[#allocation4] sm:$0x1] 0.0
    $region21: #{tpu_custom_call.1} parent=1 // pred_fallthru
      _
    %v55 = vld [vmem:[#allocation5] sm:$0xff]
    %v56 = vld [vmem:[#allocation8] sm:$0xff]
    %v57 = vand.u32 2147483647, %v55
    %v58 = vsub.f32 0.0, %v57
    %v59 = vmul.f32 %v58, 1.442695
    %v60 = vpow.pop %v59
    %v61 = vadd.f32 %v60, 1.0
    %v62 = vlog2.pop %v61
    %v63 = vmul.f32 %v62, 0.6931472
    %v64 = vmin.f32 %v55, 0.0
    %v65 = vsub.f32 %v64, %v63
    %v66 = vmax.f32 %v65, -100.0
    %v67 = vmax.f32 %v55, 0.0
    %v68 = vsub.f32 0.0, %v67
    %v69 = vsub.f32 %v68, %v63
    %v70 = vmax.f32 %v69, -100.0
    %v71 = vmul.f32 %v56, %v66
    %v72 = vsub.f32 1.0, %v56
    %v73 = vmul.f32 %v72, %v70
    %v74 = vadd.f32 %v71, %v73
    %v75 = vsub.f32 0.0, %v74
    %vm76 = vcmp.ne.f32.partialorder %v56, 0.0
    %v77 = vld [vmem:[#allocation2] sm:$0x1]
    %v78 = vrot.slane %v75, 4
    %v79 = vadd.f32 %v75, %v78
    %v80 = vrot.slane %v79, 2
    %v81 = vadd.f32 %v79, %v80
    %v82 = vrot.slane %v81, 1
    %v83 = vadd.f32 %v81, %v82
    %v84 = vadd.f32 %v77, %v83
    %85 = vst [vmem:[#allocation2] sm:$0x1] %v84
    %v86 = vld [vmem:[#allocation3] sm:$0x1]
    %v87 = vsel %vm76, %v75, 0.0
    %v88 = vrot.slane %v87, 4
    %v89 = vadd.f32 %v87, %v88
    %v90 = vrot.slane %v89, 2
    %v91 = vadd.f32 %v89, %v90
    %v92 = vrot.slane %v91, 1
    %v93 = vadd.f32 %v91, %v92
    %v94 = vadd.f32 %v86, %v93
    %95 = vst [vmem:[#allocation3] sm:$0x1] %v94
    %v96 = vld [vmem:[#allocation4] sm:$0x1]
    %v97 = vsel %vm76, 1, 0
    %v98 = vcvt.s32.f32 %v97
    %v99 = vrot.slane %v98, 4
    %v100 = vadd.f32 %v98, %v99
    %v101 = vrot.slane %v100, 2
    %v102 = vadd.f32 %v100, %v101
    %v103 = vrot.slane %v102, 1
    %v104 = vadd.f32 %v102, %v103
    %v105 = vadd.f32 %v96, %v104
    %106 = vst [vmem:[#allocation4] sm:$0x1] %v105
    // Predicated region
    $region22: #{tpu_custom_call.1} parent=1 // pred_check
      %p107 = pneg %p48
    $region23: #{tpu_custom_call.1} parent=1 // pred_check_branch
      %109 = sbr.rel (%p107) target = $region25
    $region24: #{tpu_custom_call.1} parent=1 // pred_region
      %v110 = vlaneseq
      %v111 = vshrl.u32 %v110, 7
      %vm112 = vcmp.eq.s32.totalorder %v111, 0
      %v113 = vld [vmem:[#allocation2] sm:$0x1]
      %vm114 = vcmp.eq.s32.totalorder %v111, 1
      %v115 = vld [vmem:[#allocation3] sm:$0x1]
      %vm116 = vcmp.eq.s32.totalorder %v111, 2
      %v117 = vld [vmem:[#allocation4] sm:$0x1]
      %v119 = vperm.slane %v117, 0
      %v121 = vsel %vm116, %v119, 0.0
      %v123 = vperm.slane %v115, 0
      %v125 = vsel %vm114, %v123, %v121
      %v127 = vperm.slane %v113, 0
      %v129 = vsel %vm112, %v127, %v125
      %130 = vst [vmem:[#allocation10] sm:$0xff] %v129
    $region25: #{tpu_custom_call.1} parent=1 // pred_fallthru
      _
    // Predicated region
    $region26: #{tpu_custom_call.1} parent=1 // pred_check
      _
    $region27: #{tpu_custom_call.1} parent=1 // pred_check_branch
      %132 = sbr.rel (0) target = $region29
    $region28: #{tpu_custom_call.1} parent=1 // pred_region
      %134 = vsyncadd [#allocation7], 0
      %s136 = sshll.u32 [#allocation10], 4
      %s137 = int_to_ptr.vmem [resolvable:$true] %s136
      %s138 = sshll.u32 %s2, 4
      %s139 = int_to_ptr.hbm [resolvable:$true] %s138
      %141 = dma.vmem_to_hbm [thread:$0]  %s137, 128, %s139, [#allocation7]
    $region29: #{tpu_custom_call.1} parent=1 // pred_fallthru
      _
    // Predicated region
    $region30: #{tpu_custom_call.1} parent=1 // pred_check
      _
    $region31: #{tpu_custom_call.1} parent=1 // pred_check_branch
      %143 = sbr.rel (0) target = $region33
    $region32: #{tpu_custom_call.1} parent=1 // pred_region
      %145 = dma.done [#allocation7], 128
    $region33: #{tpu_custom_call.1} parent=1 // pred_fallthru
      _
    %146 = vsyncpa [#allocation6], 1
    %147 = vsyncpa [#allocation9], 1
    %148 = vsyncpa [#allocation7], 1

</llo_original>
